<compile_context>
chip_gen: v5e
topology: v5e:2x2
jax: 0.10.0
libtpu: 0.0.40
codegen_flags: <defaults>
</compile_context>

<pallas_src>
import functools

import jax
import jax.numpy as jnp
from jax.experimental import pallas as pl
from jax.experimental.pallas import tpu as pltpu


def _rlw_kernel(logits_ref, losses_ref, out_ref):
    """logits_ref / losses_ref: (1, n) f32 in VMEM.
    out_ref: (2, n) f32 in VMEM; row 0 = softmax weights, row 1 = total (broadcast)."""
    g = logits_ref[...]                                            # (1, n)

    # Numerically stable softmax along the lane axis (XLU reduce + EUP exp).
    m = jnp.max(g, axis=-1, keepdims=True)                         # (1, 1)
    e = jnp.exp(g - m)
    w = e / jnp.sum(e, axis=-1, keepdims=True)                     # exact: sums to ~1

    # Weighted reduction on VPU + XLU (deliberately NOT an MXU matmul).
    total = jnp.sum(w * losses_ref[...], axis=-1, keepdims=True)   # (1, 1)

    out_ref[0:1, :] = w
    out_ref[1:2, :] = jnp.broadcast_to(total, w.shape)             # full-row store


@functools.lru_cache(maxsize=None)
def _build_rlw_call(n):
    return pl.pallas_call(
        _rlw_kernel,
        out_shape=jax.ShapeDtypeStruct((2, n), jnp.float32),
        in_specs=[
            pl.BlockSpec(memory_space=pltpu.MemorySpace.VMEM),  # gaussian logits row
            pl.BlockSpec(memory_space=pltpu.MemorySpace.VMEM),  # losses row
        ],
        out_specs=pl.BlockSpec(memory_space=pltpu.MemorySpace.VMEM),
        cost_estimate=pl.CostEstimate(
            flops=10 * n, transcendentals=n, bytes_accessed=16 * n
        ),
    )


def _rlw_impl(logits_row, losses_row):
    n = losses_row.shape[-1]
    out = _build_rlw_call(n)(logits_row, losses_row)
    return out[1, 0], out[0]                                        # (total, weights)


# --- custom VJP: d total / d loss_i = w_i; no grad through the random weights. ---
@jax.custom_vjp
def _rlw_from_logits(logits_row, losses_row):
    return _rlw_impl(logits_row, losses_row)


def _rlw_from_logits_fwd(logits_row, losses_row):
    total, w = _rlw_impl(logits_row, losses_row)
    return (total, w), w


def _rlw_from_logits_bwd(w, cts):
    g_total, _ = cts                       # ignore cotangent on the weights output
    d_losses = (g_total * w)[None, :]      # (1, n)
    d_logits = jnp.zeros_like(d_losses)    # randn weights carry no gradient
    return d_logits, d_losses


_rlw_from_logits.defvjp(_rlw_from_logits_fwd, _rlw_from_logits_bwd)


def rlw_loss(key, losses):
    """Pure functional RLW forward. Inline this into your training-step jit.

    Args:
      key: jax PRNG key (fresh per step).
      losses: length-n vector (or sequence of scalars) of per-task losses.
    Returns:
      (total_loss, weights) with weights = softmax(N(0, I_n)), total = <w, losses>.
    """
    losses_row = jnp.asarray(losses, jnp.float32).reshape(1, -1)
    n = losses_row.shape[1]
    logits_row = jax.random.normal(key, (1, n), dtype=jnp.float32)
    return _rlw_from_logits(logits_row, losses_row)


class RLWLoss:
    """JAX/Pallas port of the PyTorch RLWLoss (Random Loss Weighting).

    Eager convenience wrapper: draws fresh random weights every call by splitting an
    internal PRNG key.  For training loops, prefer calling `rlw_loss(key, losses)`
    directly inside your step jit and threading the key explicitly (the host-side key
    split here is not trace-safe under an outer jit/scan/vmap).
    """

    def __init__(self, n, seed=0):
        assert n >= 1
        self.n = n
        self._key = jax.random.PRNGKey(seed)
        self._fn = jax.jit(rlw_loss)
        self.cur_weights = None

    def get_coefs(self):
        return self.cur_weights

    def __call__(self, *losses):
        assert len(losses) == self.n
        self._key, sub = jax.random.split(self._key)
        losses_vec = jnp.stack(
            [jnp.asarray(l, jnp.float32).reshape(()) for l in losses]
        )
        total, w = self._fn(sub, losses_vec)
        self.cur_weights = w
        return total


if __name__ == "__main__":
    key = jax.random.PRNGKey(0)
    n_losses = 4

    # Deterministic scalar "losses" (e.g. outputs of individual heads).
    loss_vals = jax.random.uniform(key, (n_losses,), dtype=jnp.float32)
    losses = [loss_vals[i] for i in range(n_losses)]

    # --- Module-style usage ---
    module = RLWLoss(n_losses, seed=0)
    total = jax.block_until_ready(module(*losses))
    w = module.get_coefs()

    # (1) weights are a softmax: non-negative and sum to 1
    assert w.shape == (n_losses,)
    assert bool(jnp.all(w >= 0.0)), w
    assert jnp.allclose(jnp.sum(w), 1.0, atol=1e-5), jnp.sum(w)
    # (2) total == sum_i w_i * loss_i
    ref = jnp.sum(w * loss_vals)
    assert jnp.allclose(total, ref, rtol=1e-5, atol=1e-6), (total, ref)

    # --- Pure functional usage (inlinable into a training-step jit) ---
    fkey = jax.random.PRNGKey(123)
    total2, w2 = jax.block_until_ready(rlw_loss(fkey, loss_vals))
    assert jnp.allclose(total2, jnp.sum(w2 * loss_vals), rtol=1e-5, atol=1e-6)

    # (3) determinism: same key -> identical weights / total
    total3, w3 = jax.block_until_ready(rlw_loss(fkey, loss_vals))
    assert jnp.allclose(w3, w2, rtol=1e-6, atol=1e-6)
    assert jnp.allclose(total3, total2, rtol=1e-6, atol=1e-6)

    # (4) custom_vjp: d total / d loss_i == w_i
    grads = jax.block_until_ready(
        jax.grad(lambda lv: rlw_loss(fkey, lv)[0])(loss_vals)
    )
    assert jnp.allclose(grads, w2, rtol=1e-5, atol=1e-6), (grads, w2)

    print("KERNEL_OK")
</pallas_src>

<mosaic_0001>
module attributes {stable_mosaic.version = 11 : i64} {
  func.func @_rlw_kernel(%arg0: memref<1x4xf32, #tpu.memory_space<vmem>>, %arg1: memref<1x4xf32, #tpu.memory_space<vmem>>, %arg2: memref<2x4xf32, #tpu.memory_space<vmem>>) attributes {dimension_semantics = [], scalar_prefetch = 0 : i64, scratch_operands = 0 : i64, tpu.core_type = #tpu.core_type<tc>} {
    %c0 = arith.constant 0 : index
    %c0_0 = arith.constant 0 : index
    %0 = vector.load %arg0[%c0, %c0_0] : memref<1x4xf32, #tpu.memory_space<vmem>>, vector<1x4xf32>
    %cst = arith.constant dense<0xFF800000> : vector<1xf32>
    %1 = vector.multi_reduction <maximumf>, %0, %cst [1] : vector<1x4xf32> to vector<1xf32>
    %2 = vector.shape_cast %1 : vector<1xf32> to vector<1x1xf32>
    %3 = vector.broadcast %2 : vector<1x1xf32> to vector<1x4xf32>
    %4 = arith.subf %0, %3 : vector<1x4xf32>
    %5 = math.exp %4 : vector<1x4xf32>
    %cst_1 = arith.constant dense<0.000000e+00> : vector<1xf32>
    %6 = vector.multi_reduction <add>, %5, %cst_1 [1] : vector<1x4xf32> to vector<1xf32>
    %7 = vector.shape_cast %6 : vector<1xf32> to vector<1x1xf32>
    %8 = vector.broadcast %7 : vector<1x1xf32> to vector<1x4xf32>
    %9 = arith.divf %5, %8 : vector<1x4xf32>
    %c0_2 = arith.constant 0 : index
    %c0_3 = arith.constant 0 : index
    %10 = vector.load %arg1[%c0_2, %c0_3] : memref<1x4xf32, #tpu.memory_space<vmem>>, vector<1x4xf32>
    %11 = arith.mulf %9, %10 : vector<1x4xf32>
    %cst_4 = arith.constant dense<0.000000e+00> : vector<1xf32>
    %12 = vector.multi_reduction <add>, %11, %cst_4 [1] : vector<1x4xf32> to vector<1xf32>
    %13 = vector.shape_cast %12 : vector<1xf32> to vector<1x1xf32>
    %c0_5 = arith.constant 0 : index
    %c0_6 = arith.constant 0 : index
    %14 = vector.load %arg2[%c0_5, %c0_6] : memref<2x4xf32, #tpu.memory_space<vmem>>, vector<1x4xf32>
    tpu.vector_store %arg2[%c0_5, %c0_6], %9 {strides = array<i32>} : memref<2x4xf32, #tpu.memory_space<vmem>>, vector<1x4xf32>,
    %15 = vector.shape_cast %13 : vector<1x1xf32> to vector<1x1xf32>
    %16 = vector.broadcast %15 : vector<1x1xf32> to vector<1x4xf32>
    %c1 = arith.constant 1 : index
    %c0_7 = arith.constant 0 : index
    %17 = vector.load %arg2[%c1, %c0_7] : memref<2x4xf32, #tpu.memory_space<vmem>>, vector<1x4xf32>
    tpu.vector_store %arg2[%c1, %c0_7], %16 {strides = array<i32>} : memref<2x4xf32, #tpu.memory_space<vmem>>, vector<1x4xf32>,
    return
  }
}

</mosaic_0001>

<llo_original>
// kernel: rlw_loss.1
$region0: #{rlw_loss.1}
  #allocation0 [shape = 'u32[]', space=smem, size = 0x4, offset = 0x4, fixed_abs, tag = 'smem constant byte address 0x4 - core index']
  #allocation1 [shape = 'u32[72,128]{1,0:T(1,128)}', space=vmem, size = 0x9000, scoped, tag = 'internal scratch']
  %s0 = inlined_call_operand.vmem [shape: f32[1,4], index: 0, kind: input, shape index: {}]
  %s1 = inlined_call_operand.vmem [shape: f32[1,4], index: 1, kind: input, shape index: {}]
  %s2 = inlined_call_operand.vmem [shape: f32[2,4], index: 2, kind: output, shape index: {}]
  %s3 = sld [smem:[#allocation0]]
  $region18: #{rlw_loss.1} parent=0
    _
  %s5 = ssub.s32 1, %s3
  %s6 = scalar_select 0, %s5, %s3
  // Predicated region
  $region2: #{rlw_loss.1} parent=0 // pred_check
    _
  $region3: #{rlw_loss.1} parent=0 // pred_check_branch
    %8 = sbr.rel (0) target = $region5
  $region4: #{rlw_loss.1} parent=0 // pred_region
    _
  $region5: #{rlw_loss.1} parent=0 // pred_fallthru
    _
  // Predicated region
  $region6: #{rlw_loss.1} parent=0 // pred_check
    _
  $region7: #{rlw_loss.1} parent=0 // pred_check_branch
    %10 = sbr.rel (0) target = $region9
  $region8: #{rlw_loss.1} parent=0 // pred_region
    _
  $region9: #{rlw_loss.1} parent=0 // pred_fallthru
    _
  %v11 = vld [vmem:[%s0] sm:$0x1]
  %vm12 = vcmask 24576
  %v13 = vsel %vm12, %v11, -inf
  %14 = vmax.xlane.f32.xlu0 %v13
  %v15 = vpop.xlane.xlu0 %14
  %v16 = vsub.f32 %v11, %v15
  %v17 = vmul.f32 %v16, 1.442695
  %v18 = vpow.pop %v17
  %v19 = vsel %vm12, %v18, 0.0
  %20 = vadd.xlane.f32.xlu0 %v19
  %v21 = vpop.xlane.xlu0 %20
  %v22 = vrcp.pop %v21
  %v23 = vmul.f32 %v21, %v22
  %v24 = vsub.f32 1.0, %v23
  %v25 = vmul.f32 %v22, %v24
  %v26 = vadd.f32 %v22, %v25
  %vm27 = vweird.f32 %v21
  %vm28 = vweird.f32 %v22
  %vm29 = vmor %vm27, %vm28
  %v30 = vsel %vm29, %v22, %v26
  %v31 = vand.u32 2147483647, %v21
  %vm32 = vcmp.eq.f32.partialorder %v31, 8.507059e+37
  %v33 = vand.u32 %v21, 2147483648
  %v34 = vor.u32 1.1754944e-38, %v33
  %v35 = vsel %vm32, %v34, %v30
  %v36 = vmul.f32 %v18, %v35
  %v37 = vld [vmem:[%s1] sm:$0x1]
  %v38 = vmul.f32 %v36, %v37
  %v39 = vsel %vm12, %v38, 0.0
  %40 = vadd.xlane.f32.xlu0 %v39
  %v41 = vpop.xlane.xlu0 %40
  %42 = vst.msk [vmem:[%s2] sm:$0x1] %vm12, %v36
  %43 = vst.msk [vmem:[%s2 + $0x1] sm:$0x1] %vm12, %v41
  // Predicated region
  $region10: #{rlw_loss.1} parent=0 // pred_check
    _
  $region11: #{rlw_loss.1} parent=0 // pred_check_branch
    %45 = sbr.rel (0) target = $region13
  $region12: #{rlw_loss.1} parent=0 // pred_region
    _
  $region13: #{rlw_loss.1} parent=0 // pred_fallthru
    _
  // Predicated region
  $region14: #{rlw_loss.1} parent=0 // pred_check
    _
  $region15: #{rlw_loss.1} parent=0 // pred_check_branch
    %47 = sbr.rel (0) target = $region17
  $region16: #{rlw_loss.1} parent=0 // pred_region
    _
  $region17: #{rlw_loss.1} parent=0 // pred_fallthru
    _

</llo_original>
